<compile_context>
chip_gen: v6e
topology: v6e:2x2x1
jax: 0.10.0
libtpu: 0.0.40
codegen_flags: <defaults>
</compile_context>

<pallas_src>
import functools
import math

import numpy as np

import jax
import jax.numpy as jnp
from jax.experimental import pallas as pl
from jax.experimental.pallas import tpu as pltpu


_SQRT_2_OVER_PI = math.sqrt(2.0 / math.pi)


def _gelu(x, approx):
    if approx:
        # tanh approximation -> EUP transcendental (free bundle slot).
        return 0.5 * x * (1.0 + jnp.tanh(_SQRT_2_OVER_PI
                                         * (x + 0.044715 * x * x * x)))
    # Exact erf GELU (nn.GELU default). Lowers to a VPU polynomial; only use
    # when the accuracy budget demands bit-faithful PyTorch semantics.
    return 0.5 * x * (1.0 + jax.lax.erf(x * (1.0 / math.sqrt(2.0))))


def _multitask_head_kernel(x_ref, w1_ref, b1_ref, w2_ref, b2_ref, out_ref, *,
                           output_dim, ew_dtype, approx_gelu):
    # Shared pre-activation on the small (tb, H) tile -> keep f32.
    x = _gelu(x_ref[...].astype(jnp.float32), approx_gelu)

    # Fused first layer of BOTH heads: (tb, H) @ (H, 8H), f32 accumulation.
    h = jnp.dot(x.astype(w1_ref.dtype), w1_ref[...],
                preferred_element_type=jnp.float32)

    # Bias add + GELU on the (tb, 8H) intermediate in ew_dtype
    # (bf16 on v6e/v7x: halves VPU element ops and vreg pressure; f32 on v5e).
    h = h.astype(ew_dtype) + b1_ref[...].astype(ew_dtype)
    h = _gelu(h, approx_gelu)
    # Dropout(p=0.0) == identity -> omitted.

    # Fused second layer via lane-padded block-diagonal weight:
    # (tb, 8H) @ (8H, O2p) -> (tb, O2p) = [outcome | los | zero padding].
    logits = jnp.dot(h.astype(w2_ref.dtype), w2_ref[...],
                     preferred_element_type=jnp.float32) + b2_ref[...]

    # Sigmoid only on the outcome lanes (first `output_dim`).
    col = jax.lax.broadcasted_iota(jnp.int32, logits.shape, dimension=1)
    fused = jnp.where(col < output_dim, jax.nn.sigmoid(logits), logits)
    out_ref[...] = fused.astype(out_ref.dtype)


def fuse_params(params, matmul_dtype=jnp.bfloat16):
    """Precompute the fused weight set ONCE (hoisted out of the call path).

    w1: (H, 8H) = [w1_outcome | w1_los];  w2: (8H, O2p) block-diagonal with
    the last dim zero-padded up to a multiple of 128 lanes (lane-dense output).
    """
    h4 = params["w1_outcome"].shape[1]            # 4 * hidden_dim
    o = params["w2_outcome"].shape[1]             # output_dim
    o2 = 2 * o
    o2p = max(128, ((o2 + 127) // 128) * 128)     # lane-dense output width

    w1 = jnp.concatenate([params["w1_outcome"], params["w1_los"]], axis=1)
    b1 = jnp.concatenate([params["b1_outcome"], params["b1_los"]], axis=1)

    w2 = jnp.zeros((2 * h4, o2p), jnp.float32)
    w2 = w2.at[:h4, :o].set(params["w2_outcome"])
    w2 = w2.at[h4:, o:o2].set(params["w2_los"])
    b2 = jnp.zeros((1, o2p), jnp.float32)
    b2 = b2.at[:, :o].set(params["b2_outcome"])
    b2 = b2.at[:, o:o2].set(params["b2_los"])

    return {
        "w1": w1.astype(matmul_dtype), "b1": b1.astype(jnp.float32),
        "w2": w2.astype(matmul_dtype), "b2": b2.astype(jnp.float32),
        "output_dim": o, "padded_out": o2p,
    }


def _device_caps():
    kind = ""
    try:
        kind = jax.devices()[0].device_kind.lower()
    except Exception:
        pass
    try:
        vmem_cap = int(pltpu.get_tpu_info().vmem_capacity_bytes)
    except Exception:
        vmem_cap = 64 << 20                       # conservative (v7x ceiling)
    bf16_elementwise = ("v6" in kind) or ("v7" in kind)   # v5e/v4: no bf16 VPU/EUP
    two_tensorcores = "v7" in kind                         # 2 TCs per chip on v7x
    return {"kind": kind, "vmem_cap": vmem_cap,
            "bf16_elementwise": bf16_elementwise,
            "two_tensorcores": two_tensorcores}


def multitask_head_forward(x, fused, *, block_batch=512, ew_dtype=None,
                           approx_gelu=True):
    """x: (B, hidden_dim) f32. `fused` from fuse_params(). Returns (outcome, los).

    ew_dtype: dtype of the elementwise (bias + GELU) phase on the (tb, 8H)
      intermediate; None -> bf16 on v6e/v7x, f32 on older generations.
    approx_gelu: tanh GELU (EUP, default) vs exact erf (VPU polynomial).
    """
    B, H = x.shape
    O = fused["output_dim"]
    O2p = fused["padded_out"]
    w1, b1, w2, b2 = fused["w1"], fused["b1"], fused["w2"], fused["b2"]
    H8 = w1.shape[1]

    caps = _device_caps()
    if ew_dtype is None:
        ew_dtype = jnp.bfloat16 if caps["bf16_elementwise"] else jnp.float32
    ew_size = np.dtype(ew_dtype).itemsize

    itemsize = lambda a: a.size * a.dtype.itemsize
    weight_bytes = sum(itemsize(a) for a in (w1, b1, w2, b2))

    def vmem_needed(tb):
        # Every input BlockSpec is double-buffered by default -> count x/out
        # tiles and the (constant-index) weights twice; plus f32/ew intermediates.
        return (2 * weight_bytes
                + 2 * tb * H * x.dtype.itemsize       # x tiles (2 buffers)
                + 2 * tb * O2p * 4                    # out tiles (2 buffers)
                + tb * H * 4                          # f32 pre-GELU x
                + 3 * tb * H8 * ew_size)              # h + elementwise temps

    vmem_budget = caps["vmem_cap"] - (8 << 20)        # leave headroom

    # --- batch tile selection ------------------------------------------------
    tb = min(block_batch, B)
    if caps["two_tensorcores"] and B > 8:
        # Guarantee >= 2 grid steps so ("parallel",) can shard across both TCs.
        half8 = ((-(-B // 2)) + 7) // 8 * 8
        tb = min(tb, half8)
    if tb < B and tb % 8 != 0:
        tb = max(8, (tb // 8) * 8)
    while tb > 8 and vmem_needed(tb) > vmem_budget:
        tb = max(8, ((tb // 2) // 8) * 8)

    grid = (pl.cdiv(B, tb),)
    kernel = functools.partial(_multitask_head_kernel, output_dim=O,
                               ew_dtype=ew_dtype, approx_gelu=approx_gelu)

    cost = pl.CostEstimate(
        flops=2 * B * H * H8 + 2 * B * H8 * O2p,
        transcendentals=(B * (H + H8 + O)) if approx_gelu else B * O,
        bytes_accessed=itemsize(x) + weight_bytes + B * O2p * 4,
    )

    compiler_kwargs = dict(dimension_semantics=("parallel",))
    vmem_est = vmem_needed(tb)
    if vmem_est > (16 << 20):     # tightest scoped default (v5e)
        compiler_kwargs["vmem_limit_bytes"] = int(
            min(1.25 * vmem_est, caps["vmem_cap"] - (4 << 20)))

    out = pl.pallas_call(
        kernel,
        out_shape=jax.ShapeDtypeStruct((B, O2p), jnp.float32),
        grid=grid,
        in_specs=[
            # TODO(synk): accept x in bf16 (upcast in-kernel) if a caller is
            # ever x-DMA-bound (large B, small H); irrelevant when MXU-bound.
            pl.BlockSpec((tb, H), lambda i: (i, 0)),     # x: tiled over batch
            pl.BlockSpec((H, H8), lambda i: (0, 0)),     # VMEM-resident weights
            pl.BlockSpec((1, H8), lambda i: (0, 0)),
            pl.BlockSpec((H8, O2p), lambda i: (0, 0)),
            pl.BlockSpec((1, O2p), lambda i: (0, 0)),
        ],
        out_specs=pl.BlockSpec((tb, O2p), lambda i: (i, 0)),
        compiler_params=pltpu.CompilerParams(**compiler_kwargs),
        cost_estimate=cost,
    )(x, w1, b1, w2, b2)

    return out[:, :O], out[:, O:2 * O]


def init_params(key, hidden_dim, output_dim):
    """Deterministic init matching nn.Linear's U(-1/sqrt(fan_in), 1/sqrt(fan_in))."""
    keys = jax.random.split(key, 8)

    def linear(kw, kb, fan_in, fan_out):
        bound = 1.0 / math.sqrt(fan_in)
        w = jax.random.uniform(kw, (fan_in, fan_out), jnp.float32, -bound, bound)
        b = jax.random.uniform(kb, (1, fan_out), jnp.float32, -bound, bound)
        return w, b

    w1o, b1o = linear(keys[0], keys[1], hidden_dim, 4 * hidden_dim)
    w2o, b2o = linear(keys[2], keys[3], 4 * hidden_dim, output_dim)
    w1l, b1l = linear(keys[4], keys[5], hidden_dim, 4 * hidden_dim)
    w2l, b2l = linear(keys[6], keys[7], 4 * hidden_dim, output_dim)
    return {
        "w1_outcome": w1o, "b1_outcome": b1o,
        "w2_outcome": w2o, "b2_outcome": b2o,
        "w1_los": w1l, "b1_los": b1l,
        "w2_los": w2l, "b2_los": b2l,
    }


def _reference(x, p, approx_gelu):
    # Pure-JAX f32 reference mirroring the PyTorch module.
    xg = _gelu(x, approx_gelu)

    def head(w1, b1, w2, b2):
        h = _gelu(xg @ w1 + b1, approx_gelu)
        return h @ w2 + b2

    outcome = jax.nn.sigmoid(head(p["w1_outcome"], p["b1_outcome"],
                                  p["w2_outcome"], p["b2_outcome"]))
    los = head(p["w1_los"], p["b1_los"], p["w2_los"], p["b2_los"])
    return outcome, los


if __name__ == "__main__":
    hidden_dim = 32
    output_dim = 8
    batch = 16

    key = jax.random.PRNGKey(0)
    kx, kp = jax.random.split(key)
    x = jax.random.normal(kx, (batch, hidden_dim), dtype=jnp.float32)
    params = init_params(kp, hidden_dim, output_dim)

    # --- strict path: f32 operands, f32 elementwise, exact erf GELU ---------
    # (block_batch=8 exercises a multi-step pipelined batch grid.)
    fused_f32 = fuse_params(params, matmul_dtype=jnp.float32)
    fwd_exact = jax.jit(lambda xx: multitask_head_forward(
        xx, fused_f32, block_batch=8, ew_dtype=jnp.float32, approx_gelu=False))
    outcome, los = jax.block_until_ready(fwd_exact(x))
    ref_outcome, ref_los = _reference(x, params, approx_gelu=False)
    assert jnp.allclose(outcome, ref_outcome, atol=1e-5, rtol=1e-5)
    assert jnp.allclose(los, ref_los, atol=1e-5, rtol=1e-5)

    # --- performance defaults: bf16 matmul operands, tanh GELU, bf16
    #     elementwise on v6e/v7x (f32 on v5e/v4), auto tile / grid ------------
    fused_bf16 = fuse_params(params, matmul_dtype=jnp.bfloat16)
    fwd_fast = jax.jit(lambda xx: multitask_head_forward(xx, fused_bf16))
    outcome_f, los_f = jax.block_until_ready(fwd_fast(x))
    ref_outcome_t, ref_los_t = _reference(x, params, approx_gelu=True)
    assert jnp.allclose(outcome_f, ref_outcome_t, atol=3e-2, rtol=3e-2)
    assert jnp.allclose(los_f, ref_los_t, atol=3e-2, rtol=3e-2)

    print("KERNEL_OK")
</pallas_src>

<mosaic_0001>
module attributes {stable_mosaic.version = 11 : i64} {
  func.func @_multitask_head_kernel(%arg0: i32, %arg1: memref<8x32xf32, #tpu.memory_space<vmem>>, %arg2: memref<32x256xf32, #tpu.memory_space<vmem>>, %arg3: memref<1x256xf32, #tpu.memory_space<vmem>>, %arg4: memref<256x128xf32, #tpu.memory_space<vmem>>, %arg5: memref<1x128xf32, #tpu.memory_space<vmem>>, %arg6: memref<8x128xf32, #tpu.memory_space<vmem>>) attributes {dimension_semantics = [#tpu.dimension_semantics<parallel>], iteration_bounds = array<i64: 2>, scalar_prefetch = 0 : i64, scratch_operands = 0 : i64, tpu.core_type = #tpu.core_type<tc>, window_params = [{transform_indices = @transform_0, window_bounds = array<i64: 8, 32>}, {pipeline_mode = #tpu.pipeline_mode<synchronous>, transform_indices = @transform_1, window_bounds = array<i64: 32, 256>}, {pipeline_mode = #tpu.pipeline_mode<synchronous>, transform_indices = @transform_2, window_bounds = array<i64: 1, 256>}, {pipeline_mode = #tpu.pipeline_mode<synchronous>, transform_indices = @transform_3, window_bounds = array<i64: 256, 128>}, {pipeline_mode = #tpu.pipeline_mode<synchronous>, transform_indices = @transform_4, window_bounds = array<i64: 1, 128>}, {transform_indices = @transform_5, window_bounds = array<i64: 8, 128>}]} {
    %c0 = arith.constant 0 : index
    %c0_0 = arith.constant 0 : index
    %0 = vector.load %arg1[%c0, %c0_0] : memref<8x32xf32, #tpu.memory_space<vmem>>, vector<8x32xf32>
    %cst = arith.constant 5.000000e-01 : f32
    %1 = vector.broadcast %cst : f32 to vector<8x32xf32>
    %2 = arith.mulf %1, %0 : vector<8x32xf32>
    %cst_1 = arith.constant 0.707106769 : f32
    %3 = vector.broadcast %cst_1 : f32 to vector<8x32xf32>
    %4 = arith.mulf %0, %3 : vector<8x32xf32>
    %5 = math.erf %4 : vector<8x32xf32>
    %cst_2 = arith.constant 1.000000e+00 : f32
    %6 = vector.broadcast %cst_2 : f32 to vector<8x32xf32>
    %7 = arith.addf %6, %5 : vector<8x32xf32>
    %8 = arith.mulf %2, %7 : vector<8x32xf32>
    %c0_3 = arith.constant 0 : index
    %c0_4 = arith.constant 0 : index
    %9 = vector.load %arg2[%c0_3, %c0_4] : memref<32x256xf32, #tpu.memory_space<vmem>>, vector<32x256xf32>
    %cst_5 = arith.constant dense<0.000000e+00> : vector<8x256xf32>
    %10 = tpu.matmul %8, %9, %cst_5 {dimension_numbers = #tpu.dot_dimension_numbers<[1], [0], [0], [1], [0, 0, 1, 1], [], []>} : vector<8x32xf32>, vector<32x256xf32>, vector<8x256xf32> -> vector<8x256xf32>
    %c0_6 = arith.constant 0 : index
    %c0_7 = arith.constant 0 : index
    %11 = vector.load %arg3[%c0_6, %c0_7] : memref<1x256xf32, #tpu.memory_space<vmem>>, vector<1x256xf32>
    %12 = vector.broadcast %11 : vector<1x256xf32> to vector<8x256xf32>
    %13 = arith.addf %10, %12 : vector<8x256xf32>
    %cst_8 = arith.constant 5.000000e-01 : f32
    %14 = vector.broadcast %cst_8 : f32 to vector<8x256xf32>
    %15 = arith.mulf %14, %13 : vector<8x256xf32>
    %cst_9 = arith.constant 0.707106769 : f32
    %16 = vector.broadcast %cst_9 : f32 to vector<8x256xf32>
    %17 = arith.mulf %13, %16 : vector<8x256xf32>
    %18 = math.erf %17 : vector<8x256xf32>
    %cst_10 = arith.constant 1.000000e+00 : f32
    %19 = vector.broadcast %cst_10 : f32 to vector<8x256xf32>
    %20 = arith.addf %19, %18 : vector<8x256xf32>
    %21 = arith.mulf %15, %20 : vector<8x256xf32>
    %c0_11 = arith.constant 0 : index
    %c0_12 = arith.constant 0 : index
    %22 = vector.load %arg4[%c0_11, %c0_12] : memref<256x128xf32, #tpu.memory_space<vmem>>, vector<256x128xf32>
    %cst_13 = arith.constant dense<0.000000e+00> : vector<8x128xf32>
    %23 = tpu.matmul %21, %22, %cst_13 {dimension_numbers = #tpu.dot_dimension_numbers<[1], [0], [0], [1], [0, 0, 1, 1], [], []>} : vector<8x256xf32>, vector<256x128xf32>, vector<8x128xf32> -> vector<8x128xf32>
    %c0_14 = arith.constant 0 : index
    %c0_15 = arith.constant 0 : index
    %24 = vector.load %arg5[%c0_14, %c0_15] : memref<1x128xf32, #tpu.memory_space<vmem>>, vector<1x128xf32>
    %25 = vector.broadcast %24 : vector<1x128xf32> to vector<8x128xf32>
    %26 = arith.addf %23, %25 : vector<8x128xf32>
    %27 = tpu.iota {dimensions = array<i32: 1>} : vector<8x128xi32>
    %c8_i32 = arith.constant 8 : i32
    %28 = vector.broadcast %c8_i32 : i32 to vector<8x128xi32>
    %29 = arith.cmpi slt, %27, %28 : vector<8x128xi32>
    %30 = arith.negf %26 : vector<8x128xf32>
    %31 = math.exp %30 : vector<8x128xf32>
    %cst_16 = arith.constant 1.000000e+00 : f32
    %32 = vector.broadcast %cst_16 : f32 to vector<8x128xf32>
    %33 = arith.addf %32, %31 : vector<8x128xf32>
    %34 = arith.divf %32, %33 : vector<8x128xf32>
    %35 = arith.select %29, %34, %26 : vector<8x128xi1>, vector<8x128xf32>
    %c0_17 = arith.constant 0 : index
    %c0_18 = arith.constant 0 : index
    %36 = vector.load %arg6[%c0_17, %c0_18] : memref<8x128xf32, #tpu.memory_space<vmem>>, vector<8x128xf32>
    tpu.vector_store %arg6[%c0_17, %c0_18], %35 {strides = array<i32>} : memref<8x128xf32, #tpu.memory_space<vmem>>, vector<8x128xf32>,
    return
  }
  func.func @transform_0(%arg0: i32) -> (i32, i32) {
    %c0_i32 = arith.constant 0 : i32
    %c0_i32_0 = arith.constant 0 : i32
    return %arg0, %c0_i32 : i32, i32
  }
  func.func @transform_1(%arg0: i32) -> (i32, i32) {
    %c0_i32 = arith.constant 0 : i32
    %c0_i32_0 = arith.constant 0 : i32
    %c0_i32_1 = arith.constant 0 : i32
    return %c0_i32, %c0_i32_0 : i32, i32
  }
  func.func @transform_2(%arg0: i32) -> (i32, i32) {
    %c0_i32 = arith.constant 0 : i32
    %c0_i32_0 = arith.constant 0 : i32
    %c0_i32_1 = arith.constant 0 : i32
    return %c0_i32, %c0_i32_0 : i32, i32
  }
  func.func @transform_3(%arg0: i32) -> (i32, i32) {
    %c0_i32 = arith.constant 0 : i32
    %c0_i32_0 = arith.constant 0 : i32
    %c0_i32_1 = arith.constant 0 : i32
    return %c0_i32, %c0_i32_0 : i32, i32
  }
  func.func @transform_4(%arg0: i32) -> (i32, i32) {
    %c0_i32 = arith.constant 0 : i32
    %c0_i32_0 = arith.constant 0 : i32
    %c0_i32_1 = arith.constant 0 : i32
    return %c0_i32, %c0_i32_0 : i32, i32
  }
  func.func @transform_5(%arg0: i32) -> (i32, i32) {
    %c0_i32 = arith.constant 0 : i32
    %c0_i32_0 = arith.constant 0 : i32
    return %arg0, %c0_i32 : i32, i32
  }
}

</mosaic_0001>

<llo_original>
// kernel: _lambda_.1
$region0: #{_lambda_.1}
  #allocation0 [shape = 'u32[]', space=smem, size = 0x4, offset = 0x4, fixed_abs, tag = 'smem constant byte address 0x4 - core index']
  #allocation1 [shape = 'u32[144,128]{1,0:T(1,128)}', space=vmem, size = 0x12000, scoped, tag = 'internal scratch']
  %s0 = inlined_call_operand.hbm [shape: f32[16,32], index: 0, kind: input, shape index: {}]
  %s1 = inlined_call_operand.hbm [shape: f32[32,256], index: 1, kind: input, shape index: {}]
  %s2 = inlined_call_operand.vmem [shape: f32[1,256], index: 2, kind: input, shape index: {}]
  %s3 = inlined_call_operand.hbm [shape: f32[256,128], index: 3, kind: input, shape index: {}]
  %s4 = inlined_call_operand.vmem [shape: f32[1,128], index: 4, kind: input, shape index: {}]
  %s5 = inlined_call_operand.vmem [shape: f32[16,128], index: 5, kind: output, shape index: {}]
  %s6 = sld [smem:[#allocation0]]
  $region65: #{_lambda_.1} parent=0
    _
  %s8 = ssub.s32 1, %s6
  %s9 = scalar_select 0, %s8, %s6
  $region1: #{_lambda_.1} parent=0
    #allocation2 [shape = 'u8[8192]{0}', space=vmem, size = 0x2000, scoped, tag = 'input window, operand 0']
    #allocation3 [shape = 's32[2]{0}', space=sflag, size = 0x8, scoped, tag = 'scoped memory for _lambda_.1']
    #allocation4 [shape = 'u8[32768]{0}', space=vmem, size = 0x8000, scoped, tag = 'input window, operand 1, single buffered']
    #allocation5 [shape = 's32[1]{0}', space=sflag, size = 0x4, scoped, tag = 'scoped memory for _lambda_.1']
    #allocation6 [shape = 'u8[131072]{0}', space=vmem, size = 0x20000, scoped, tag = 'input window, operand 3, single buffered']
    %10 = vsyncpa [#allocation3], 0
    %s11 = scalar_lea.sflag [#allocation3], 1
    %12 = vsyncpa %s11, 0
    %13 = vsyncpa [#allocation5], 0
    loop: start=0, step=1, limit=4
    $region2: #{_lambda_.1} parent=1 // loop_pre_header
      _
    $region3: #{_lambda_.1} parent=1 // loop_header
      %s15 = sphi 0, %s19
      %p16 = scmp.ge.s32.totalorder %s15, 4
      %s25 = sphi 0, %s27
      %s28 = sphi 0, %s25
      %s29 = sphi 0, %s28
      %s45 = sphi 0, %s29
      %s49 = sphi 0, %s49
      %s51 = sphi 0, %s49
      %s52 = sphi 0, %s51
      %s66 = sphi 0, %s52
      %s70 = sphi 0, %s70
      %s72 = sphi 0, %s70
      %s73 = sphi 0, %s72
      %s87 = sphi 0, %s73
      %s91 = sphi 0, %s91
      %s93 = sphi 0, %s91
      %s94 = sphi 0, %s93
      %s108 = sphi 0, %s94
      %s112 = sphi 0, %s112
      %s114 = sphi 0, %s112
      %s115 = sphi 0, %s114
      %s129 = sphi 0, %s115
      %s135 = sphi 0, %s137
      %s138 = sphi 0, %s135
      %s139 = sphi 0, %s138
      %s155 = sphi 0, %s139
    $region4: #{_lambda_.1} parent=1 // loop_header_branch
      %18 = sbr.rel (%p16) target = $region8
    $region5: #{_lambda_.1} parent=1 // loop_body
      %s20 = ssub.s32 %s15, 1
      %s21 = ssub.s32 %s15, 2
      %s22 = sadd.s32 %s15, 1
      %s23 = ssub.s32 %s15, %s22
      %p24 = scmp.eq.s32.totalorder %s23, 0
      %s26 = sadd.s32 %s25, 1
      %s27 = scalar_select %p24, %s25, %s26
      %p30 = pneg %p24
      %p31 = scmp.eq.s32.totalorder %s15, 1
      %p32 = por %p30, %p31
      %p33 = scmp.ne.s32.totalorder %s25, %s28
      %p34 = scmp.eq.s32.totalorder %s15, 0
      %p35 = por %p33, %p34
      %p36 = scmp.ne.s32.totalorder %s25, %s28
      %p37 = scmp.eq.s32.totalorder %s20, 1
      %p38 = por %p36, %p37
      %p39 = scmp.ne.s32.totalorder %s28, %s29
      %p40 = scmp.eq.s32.totalorder %s20, 0
      %p41 = por %p39, %p40
      %p42 = scmp.ne.s32.totalorder %s28, %s29
      %p43 = scmp.eq.s32.totalorder %s21, 1
      %p44 = por %p42, %p43
      %p46 = scmp.ne.s32.totalorder %s29, %s45
      %p47 = scmp.eq.s32.totalorder %s21, 0
      %p48 = por %p46, %p47
      %s50 = sadd.s32 %s49, 1
      %p53 = scmp.eq.s32.totalorder %s15, 1
      %p54 = scmp.ne.s32.totalorder %s49, %s51
      %p55 = scmp.eq.s32.totalorder %s15, 0
      %p56 = por %p54, %p55
      %p57 = scmp.ne.s32.totalorder %s49, %s51
      %p58 = scmp.eq.s32.totalorder %s20, 1
      %p59 = por %p57, %p58
      %p60 = scmp.ne.s32.totalorder %s51, %s52
      %p61 = scmp.eq.s32.totalorder %s20, 0
      %p62 = por %p60, %p61
      %p63 = scmp.ne.s32.totalorder %s51, %s52
      %p64 = scmp.eq.s32.totalorder %s21, 1
      %p65 = por %p63, %p64
      %p67 = scmp.ne.s32.totalorder %s52, %s66
      %p68 = scmp.eq.s32.totalorder %s21, 0
      %p69 = por %p67, %p68
      %s71 = sadd.s32 %s70, 1
      %p74 = scmp.eq.s32.totalorder %s15, 1
      %p75 = scmp.ne.s32.totalorder %s70, %s72
      %p76 = scmp.eq.s32.totalorder %s15, 0
      %p77 = por %p75, %p76
      %p78 = scmp.ne.s32.totalorder %s70, %s72
      %p79 = scmp.eq.s32.totalorder %s20, 1
      %p80 = por %p78, %p79
      %p81 = scmp.ne.s32.totalorder %s72, %s73
      %p82 = scmp.eq.s32.totalorder %s20, 0
      %p83 = por %p81, %p82
      %p84 = scmp.ne.s32.totalorder %s72, %s73
      %p85 = scmp.eq.s32.totalorder %s21, 1
      %p86 = por %p84, %p85
      %p88 = scmp.ne.s32.totalorder %s73, %s87
      %p89 = scmp.eq.s32.totalorder %s21, 0
      %p90 = por %p88, %p89
      %s92 = sadd.s32 %s91, 1
      %p95 = scmp.eq.s32.totalorder %s15, 1
      %p96 = scmp.ne.s32.totalorder %s91, %s93
      %p97 = scmp.eq.s32.totalorder %s15, 0
      %p98 = por %p96, %p97
      %p99 = scmp.ne.s32.totalorder %s91, %s93
      %p100 = scmp.eq.s32.totalorder %s20, 1
      %p101 = por %p99, %p100
      %p102 = scmp.ne.s32.totalorder %s93, %s94
      %p103 = scmp.eq.s32.totalorder %s20, 0
      %p104 = por %p102, %p103
      %p105 = scmp.ne.s32.totalorder %s93, %s94
      %p106 = scmp.eq.s32.totalorder %s21, 1
      %p107 = por %p105, %p106
      %p109 = scmp.ne.s32.totalorder %s94, %s108
      %p110 = scmp.eq.s32.totalorder %s21, 0
      %p111 = por %p109, %p110
      %s113 = sadd.s32 %s112, 1
      %p116 = scmp.eq.s32.totalorder %s15, 1
      %p117 = scmp.ne.s32.totalorder %s112, %s114
      %p118 = scmp.eq.s32.totalorder %s15, 0
      %p119 = por %p117, %p118
      %p120 = scmp.ne.s32.totalorder %s112, %s114
      %p121 = scmp.eq.s32.totalorder %s20, 1
      %p122 = por %p120, %p121
      %p123 = scmp.ne.s32.totalorder %s114, %s115
      %p124 = scmp.eq.s32.totalorder %s20, 0
      %p125 = por %p123, %p124
      %p126 = scmp.ne.s32.totalorder %s114, %s115
      %p127 = scmp.eq.s32.totalorder %s21, 1
      %p128 = por %p126, %p127
      %p130 = scmp.ne.s32.totalorder %s115, %s129
      %p131 = scmp.eq.s32.totalorder %s21, 0
      %p132 = por %p130, %p131
      %s133 = ssub.s32 %s15, %s22
      %p134 = scmp.eq.s32.totalorder %s133, 0
      %s136 = sadd.s32 %s135, 1
      %s137 = scalar_select %p134, %s135, %s136
      %p140 = pneg %p134
      %p141 = scmp.eq.s32.totalorder %s15, 1
      %p142 = por %p140, %p141
      %p143 = scmp.ne.s32.totalorder %s135, %s138
      %p144 = scmp.eq.s32.totalorder %s15, 0
      %p145 = por %p143, %p144
      %p146 = scmp.ne.s32.totalorder %s135, %s138
      %p147 = scmp.eq.s32.totalorder %s20, 1
      %p148 = por %p146, %p147
      %p149 = scmp.ne.s32.totalorder %s138, %s139
      %p150 = scmp.eq.s32.totalorder %s20, 0
      %p151 = por %p149, %p150
      %p152 = scmp.ne.s32.totalorder %s138, %s139
      %p153 = scmp.eq.s32.totalorder %s21, 1
      %p154 = por %p152, %p153
      %p156 = scmp.ne.s32.totalorder %s139, %s155
      %p157 = scmp.eq.s32.totalorder %s21, 0
      %p158 = por %p156, %p157
      %p159 = scmp.le.s32.totalorder 1, %s15
      %p160 = scmp.lt.s32.totalorder %s15, 3
      %p161 = pnand %p159, %p160
      %p162 = pneg %p161
      // Predicated region
      $region9: #{_lambda_.1} parent=5 // pred_check
        _
      $region10: #{_lambda_.1} parent=5 // pred_check_branch
        %164 = sbr.rel (%p161) target = $region12
      $region11: #{_lambda_.1} parent=5 // pred_region
        %s165 = ssub.s32 %s15, 1
        // Predicated region
        $region13: #{_lambda_.1} parent=11 // pred_check
          %p166 = pneg %p62
        $region14: #{_lambda_.1} parent=11 // pred_check_branch
          %168 = sbr.rel (%p166) target = $region16
        $region15: #{_lambda_.1} parent=11 // pred_region
          %s170 = ssub.s32 1024, 1024
          %171 = vsyncadd [#allocation5], %s170
          %s172 = sshll.u32 [#allocation4], 4
          %s173 = int_to_ptr.vmem [resolvable:$true] %s172
          %178 = dma.hbm_to_vmem [thread:$0]  %s1, 1024, %s173, [#allocation5], 256, 256, 16
        $region16: #{_lambda_.1} parent=11 // pred_fallthru
          _
        // Predicated region
        $region17: #{_lambda_.1} parent=11 // pred_check
          %p179 = pneg %p83
        $region18: #{_lambda_.1} parent=11 // pred_check_branch
          %181 = sbr.rel (%p179) target = $region20
        $region19: #{_lambda_.1} parent=11 // pred_region
          _
        $region20: #{_lambda_.1} parent=11 // pred_fallthru
          _
        // Predicated region
        $region21: #{_lambda_.1} parent=11 // pred_check
          %p182 = pneg %p104
        $region22: #{_lambda_.1} parent=11 // pred_check_branch
          %184 = sbr.rel (%p182) target = $region24
        $region23: #{_lambda_.1} parent=11 // pred_region
          %s186 = ssub.s32 4096, 4096
          %187 = vsyncadd [#allocation5], %s186
          %s188 = sshll.u32 [#allocation6], 4
          %s189 = int_to_ptr.vmem [resolvable:$true] %s188
          %194 = dma.hbm_to_vmem [thread:$0]  %s3, 4096, %s189, [#allocation5], 128, 128, 8
        $region24: #{_lambda_.1} parent=11 // pred_fallthru
          _
        // Predicated region
        $region25: #{_lambda_.1} parent=11 // pred_check
          %p195 = pneg %p125
        $region26: #{_lambda_.1} parent=11 // pred_check_branch
          %197 = sbr.rel (%p195) target = $region28
        $region27: #{_lambda_.1} parent=11 // pred_region
          _
        $region28: #{_lambda_.1} parent=11 // pred_fallthru
          _
      $region12: #{_lambda_.1} parent=5 // pred_fallthru
        _
      %p198 = scmp.lt.s32.totalorder %s15, 2
      // Predicated region
      $region29: #{_lambda_.1} parent=5 // pred_check
        %p199 = pneg %p198
      $region30: #{_lambda_.1} parent=5 // pred_check_branch
        %201 = sbr.rel (%p199) target = $region32
      $region31: #{_lambda_.1} parent=5 // pred_region
        // Predicated region
        $region33: #{_lambda_.1} parent=31 // pred_check
          %p202 = pneg %p35
        $region34: #{_lambda_.1} parent=31 // pred_check_branch
          %204 = sbr.rel (%p202) target = $region36
        $region35: #{_lambda_.1} parent=31 // pred_region
          %s205 = sand.u32 %s25, 1
          %s206 = scalar_lea.sflag [#allocation3], %s205
          %s207 = sand.u32 %s25, 1
          %s208 = smul.addr %s207, 8
          %s209 = scalar_lea.vmem [#allocation2], %s208
          %s211 = ssub.s32 128, 128
          %212 = vsyncadd %s206, %s211
          %s213 = smul.addr %s15, 128
          %s214 = scalar_lea.hbm %s0, %s213
          %s216 = sshll.u32 %s209, 4
          %s217 = int_to_ptr.vmem [resolvable:$true] %s216
          %219 = dma.hbm_to_vmem [thread:$0]  %s214, 128, %s217, %s206
        $region36: #{_lambda_.1} parent=31 // pred_fallthru
          _
      $region32: #{_lambda_.1} parent=5 // pred_fallthru
        _
      %p220 = scmp.le.s32.totalorder 1, %s15
      %p221 = scmp.lt.s32.totalorder %s15, 3
      %p222 = pnand %p220, %p221
      %p223 = pneg %p222
      // Predicated region
      $region37: #{_lambda_.1} parent=5 // pred_check
        _
      $region38: #{_lambda_.1} parent=5 // pred_check_branch
        %225 = sbr.rel (%p222) target = $region40
      $region39: #{_lambda_.1} parent=5 // pred_region
        %s226 = ssub.s32 %s15, 1
        %s227 = sand.u32 %s28, 1
        %s228 = scalar_lea.sflag [#allocation3], %s227
        %s229 = sand.u32 %s28, 1
        %s230 = smul.addr %s229, 8
        %s231 = scalar_lea.vmem [#allocation2], %s230
        // Predicated region
        $region41: #{_lambda_.1} parent=39 // pred_check
          %p232 = pneg %p41
        $region42: #{_lambda_.1} parent=39 // pred_check_branch
          %234 = sbr.rel (%p232) target = $region44
        $region43: #{_lambda_.1} parent=39 // pred_region
          %235 = dma.done %s228, 128
        $region44: #{_lambda_.1} parent=39 // pred_fallthru
          _
        // Predicated region
        $region45: #{_lambda_.1} parent=39 // pred_check
          %p236 = pneg %p62
        $region46: #{_lambda_.1} parent=39 // pred_check_branch
          %238 = sbr.rel (%p236) target = $region48
        $region47: #{_lambda_.1} parent=39 // pred_region
          %239 = dma.done [#allocation5], 1024
        $region48: #{_lambda_.1} parent=39 // pred_fallthru
          _
        // Predicated region
        $region49: #{_lambda_.1} parent=39 // pred_check
          %p240 = pneg %p104
        $region50: #{_lambda_.1} parent=39 // pred_check_branch
          %242 = sbr.rel (%p240) target = $region52
        $region51: #{_lambda_.1} parent=39 // pred_region
          %243 = dma.done [#allocation5], 4096
        $region52: #{_lambda_.1} parent=39 // pred_fallthru
          _
        %s244 = sand.u32 %s28, 1
        %s245 = scalar_lea.sflag [#allocation3], %s244
        %s246 = sand.u32 %s28, 1
        %s247 = smul.addr %s246, 8
        %s248 = scalar_lea.vmem [#allocation2], %s247
        %p249 = pneg %p41
        %p250 = pneg %p38
        %p251 = pneg %p62
        %p252 = pneg %p59
        %p253 = pneg %p83
        %p254 = pneg %p80
        %p255 = pneg %p104
        %p256 = pneg %p101
        %p257 = pneg %p125
        %p258 = pneg %p122
        %p259 = pneg %p151
        %p260 = pneg %p148
        %p261 = scmp.lt.s32.totalorder %s20, 1
        %s262 = scalar_select %p261, %s20, 1
        %s263 = smul.addr %s262, 8
        %s264 = scalar_lea.vmem %s5, %s263
        %p265 = scmp.lt.s32.totalorder %s20, 1
        %s266 = scalar_select %p265, %s20, 1
        %s267 = smul.addr %s266, 8
        %s268 = scalar_lea.vmem %s5, %s267
        %v269 = vld [vmem:[%s231] sm:$0xff]
        %v270 = vmul.f32 %v269, 0.5
        %v271 = vmul.f32 %v269, 0.70710677
        %v272 = verf.f32.pop %v271
        %v273 = vadd.f32 %v272, 1.0
        %v274 = vmul.f32 %v270, %v273
        %v275 = vld [vmem:[#allocation4] sm:$0xff]
        %v276 = vld [vmem:[#allocation4 + $0x8] sm:$0xff]
        %v277 = vld [vmem:[#allocation4 + $0x10] sm:$0xff]
        %v278 = vld [vmem:[#allocation4 + $0x18] sm:$0xff]
        %v279 = vld [vmem:[#allocation4 + $0x20] sm:$0xff]
        %v280 = vld [vmem:[#allocation4 + $0x28] sm:$0xff]
        %v281 = vld [vmem:[#allocation4 + $0x30] sm:$0xff]
        %v282 = vld [vmem:[#allocation4 + $0x38] sm:$0xff]
        %v283 = vld [vmem:[%s2] sm:$0x3]
        %v285 = vlaneseq
        %v286 = vshrl.u32 %v285, 7
        %v287 = vsub.s32 0, %v286
        %v288 = vrot.slane %v283, %v287
        %v289 = vlaneseq
        %v290 = vshrl.u32 %v289, 7
        %v291 = vsub.s32 1, %v290
        %v292 = vrot.slane %v283, %v291
        %vm295 = vcmask 261120
        %v297 = vsel %vm295, %v274, 0
        %299 = vmatprep.subr.mxu0 0.0
        %300 = vmatpush1.msra.mxu0 0.0
        %301 = vmatprep.subr.mxu0 0.0
        %302 = vmatpush1.msra.mxu0 0.0
        %303 = vmatprep.subr.mxu0 0.0
        %304 = vmatpush1.msra.mxu0 0.0
        %305 = vmatprep.subr.mxu0 0.0
        %306 = vmatpush1.msra.mxu0 0.0
        %307 = vmatprep.subr.mxu0 0.0
        %308 = vmatpush1.msra.mxu0 0.0
        %309 = vmatprep.subr.mxu0 0.0
        %310 = vmatpush1.msra.mxu0 0.0
        %311 = vmatprep.subr.mxu0 0.0
        %312 = vmatpush1.msra.mxu0 0.0
        %313 = vmatprep.subr.mxu0 0.0
        %314 = vmatpush1.msra.mxu0 0.0
        %315 = vmatprep.subr.mxu0 0.0
        %316 = vmatpush1.msra.mxu0 0.0
        %317 = vmatprep.subr.mxu0 0.0
        %318 = vmatpush1.msra.mxu0 0.0
        %319 = vmatprep.subr.mxu0 0.0
        %320 = vmatpush1.msra.mxu0 0.0
        %321 = vmatprep.subr.mxu0 0.0
        %322 = vmatpush1.msra.mxu0 0.0
        %323 = vmatprep.subr.mxu0 %v282
        %324 = vmatpush1.msra.mxu0 %v281
        %325 = vmatprep.subr.mxu0 %v280
        %326 = vmatpush1.msra.mxu0 %v279
        %327 = vmatprep.subr.mxu0 %v278
        %328 = vmatpush1.msra.mxu0 %v277
        %329 = vmatprep.subr.mxu0 %v276
        %330 = vmatpush1.msra.mxu0 %v275
        %331 = vmatprep.subr.mxu0 0.0
        %332 = vmatpush2.msra.mxu0 0.0
        %333 = vmatprep.subr.mxu0 0.0
        %334 = vmatpush2.msra.mxu0 0.0
        %335 = vmatprep.subr.mxu0 0.0
        %336 = vmatpush2.msra.mxu0 0.0
        %337 = vmatprep.subr.mxu0 0.0
        %338 = vmatpush2.msra.mxu0 0.0
        %339 = vmatprep.subr.mxu0 0.0
        %340 = vmatpush2.msra.mxu0 0.0
        %341 = vmatprep.subr.mxu0 0.0
        %342 = vmatpush2.msra.mxu0 0.0
        %343 = vmatprep.subr.mxu0 0.0
        %344 = vmatpush2.msra.mxu0 0.0
        %345 = vmatprep.subr.mxu0 0.0
        %346 = vmatpush2.msra.mxu0 0.0
        %347 = vmatprep.subr.mxu0 0.0
        %348 = vmatpush2.msra.mxu0 0.0
        %349 = vmatprep.subr.mxu0 0.0
        %350 = vmatpush2.msra.mxu0 0.0
        %351 = vmatprep.subr.mxu0 0.0
        %352 = vmatpush2.msra.mxu0 0.0
        %353 = vmatprep.subr.mxu0 0.0
        %354 = vmatpush2.msra.mxu0 0.0
        %355 = vmatprep.subr.mxu0 0.0
        %356 = vmatpush2.msra.mxu0 0.0
        %357 = vmatprep.subr.mxu0 0.0
        %358 = vmatpush2.msra.mxu0 0.0
        %359 = vmatprep.subr.mxu0 0.0
        %360 = vmatpush2.msra.mxu0 0.0
        %361 = vmatprep.subr.mxu0 0.0
        %362 = vmatpush2.msra.mxu0 0.0
        %363 = vmatprep.mubr.f32.mxu0 0.0
        %364 = vmatmul.mubr.f32.gmra.mxu0 %v297
        %v365 = vpop.f32.mrf.mxu0
        %v366 = vadd.f32 %v288, %v365
        %v367 = vpop.f32.mrf.mxu0
        %v368 = vadd.f32 %v292, %v367
        %369 = vdwg.mxu0
        %v370 = vmul.f32 %v366, 0.5
        %v371 = vmul.f32 %v368, 0.5
        %v372 = vmul.f32 %v366, 0.70710677
        %v373 = vmul.f32 %v368, 0.70710677
        %v374 = verf.f32.pop %v372
        %v375 = verf.f32.pop %v373
        %v376 = vadd.f32 %v374, 1.0
        %v377 = vadd.f32 %v375, 1.0
        %v378 = vmul.f32 %v370, %v376
        %v379 = vmul.f32 %v371, %v377
        %v380 = vld [vmem:[#allocation6] sm:$0xff]
        %v381 = vld [vmem:[#allocation6 + $0x8] sm:$0xff]
        %v382 = vld [vmem:[#allocation6 + $0x10] sm:$0xff]
        %v383 = vld [vmem:[#allocation6 + $0x18] sm:$0xff]
        %v384 = vld [vmem:[#allocation6 + $0x20] sm:$0xff]
        %v385 = vld [vmem:[#allocation6 + $0x28] sm:$0xff]
        %v386 = vld [vmem:[#allocation6 + $0x30] sm:$0xff]
        %v387 = vld [vmem:[#allocation6 + $0x38] sm:$0xff]
        %v388 = vld [vmem:[#allocation6 + $0x40] sm:$0xff]
        %v389 = vld [vmem:[#allocation6 + $0x48] sm:$0xff]
        %v390 = vld [vmem:[#allocation6 + $0x50] sm:$0xff]
        %v391 = vld [vmem:[#allocation6 + $0x58] sm:$0xff]
        %v392 = vld [vmem:[#allocation6 + $0x60] sm:$0xff]
        %v393 = vld [vmem:[#allocation6 + $0x68] sm:$0xff]
        %v394 = vld [vmem:[#allocation6 + $0x70] sm:$0xff]
        %v395 = vld [vmem:[#allocation6 + $0x78] sm:$0xff]
        %v396 = vld [vmem:[#allocation6 + $0x80] sm:$0xff]
        %v397 = vld [vmem:[#allocation6 + $0x88] sm:$0xff]
        %v398 = vld [vmem:[#allocation6 + $0x90] sm:$0xff]
        %v399 = vld [vmem:[#allocation6 + $0x98] sm:$0xff]
        %v400 = vld [vmem:[#allocation6 + $0xa0] sm:$0xff]
        %v401 = vld [vmem:[#allocation6 + $0xa8] sm:$0xff]
        %v402 = vld [vmem:[#allocation6 + $0xb0] sm:$0xff]
        %v403 = vld [vmem:[#allocation6 + $0xb8] sm:$0xff]
        %v404 = vld [vmem:[#allocation6 + $0xc0] sm:$0xff]
        %v405 = vld [vmem:[#allocation6 + $0xc8] sm:$0xff]
        %v406 = vld [vmem:[#allocation6 + $0xd0] sm:$0xff]
        %v407 = vld [vmem:[#allocation6 + $0xd8] sm:$0xff]
        %v408 = vld [vmem:[#allocation6 + $0xe0] sm:$0xff]
        %v409 = vld [vmem:[#allocation6 + $0xe8] sm:$0xff]
        %v410 = vld [vmem:[#allocation6 + $0xf0] sm:$0xff]
        %v411 = vld [vmem:[#allocation6 + $0xf8] sm:$0xff]
        %v412 = vld [vmem:[%s4] sm:$0x1]
        %v414 = vlaneseq
        %v415 = vshrl.u32 %v414, 7
        %v416 = vsub.s32 0, %v415
        %v417 = vrot.slane %v412, %v416
        %419 = vmatprep.subr.mxu0 0.0
        %420 = vmatpush1.msra.mxu0 %v395
        %421 = vmatprep.subr.mxu0 0.0
        %422 = vmatpush1.msra.mxu0 %v394
        %423 = vmatprep.subr.mxu0 0.0
        %424 = vmatpush1.msra.mxu0 %v393
        %425 = vmatprep.subr.mxu0 0.0
        %426 = vmatpush1.msra.mxu0 %v392
        %427 = vmatprep.subr.mxu0 0.0
        %428 = vmatpush1.msra.mxu0 %v391
        %429 = vmatprep.subr.mxu0 0.0
        %430 = vmatpush1.msra.mxu0 %v390
        %431 = vmatprep.subr.mxu0 0.0
        %432 = vmatpush1.msra.mxu0 %v389
        %433 = vmatprep.subr.mxu0 0.0
        %434 = vmatpush1.msra.mxu0 %v388
        %435 = vmatprep.subr.mxu0 0.0
        %436 = vmatpush1.msra.mxu0 %v387
        %437 = vmatprep.subr.mxu0 0.0
        %438 = vmatpush1.msra.mxu0 %v386
        %439 = vmatprep.subr.mxu0 0.0
        %440 = vmatpush1.msra.mxu0 %v385
        %441 = vmatprep.subr.mxu0 0.0
        %442 = vmatpush1.msra.mxu0 %v384
        %443 = vmatprep.subr.mxu0 0.0
        %444 = vmatpush1.msra.mxu0 %v383
        %445 = vmatprep.subr.mxu0 0.0
        %446 = vmatpush1.msra.mxu0 %v382
        %447 = vmatprep.subr.mxu0 0.0
        %448 = vmatpush1.msra.mxu0 %v381
        %449 = vmatprep.subr.mxu0 0.0
        %450 = vmatpush1.msra.mxu0 %v380
        %451 = vmatprep.subr.mxu0 0.0
        %452 = vmatpush2.msra.mxu0 %v411
        %453 = vmatprep.subr.mxu0 0.0
        %454 = vmatpush2.msra.mxu0 %v410
        %455 = vmatprep.subr.mxu0 0.0
        %456 = vmatpush2.msra.mxu0 %v409
        %457 = vmatprep.subr.mxu0 0.0
        %458 = vmatpush2.msra.mxu0 %v408
        %459 = vmatprep.subr.mxu0 0.0
        %460 = vmatpush2.msra.mxu0 %v407
        %461 = vmatprep.subr.mxu0 0.0
        %462 = vmatpush2.msra.mxu0 %v406
        %463 = vmatprep.subr.mxu0 0.0
        %464 = vmatpush2.msra.mxu0 %v405
        %465 = vmatprep.subr.mxu0 0.0
        %466 = vmatpush2.msra.mxu0 %v404
        %467 = vmatprep.subr.mxu0 0.0
        %468 = vmatpush2.msra.mxu0 %v403
        %469 = vmatprep.subr.mxu0 0.0
        %470 = vmatpush2.msra.mxu0 %v402
        %471 = vmatprep.subr.mxu0 0.0
        %472 = vmatpush2.msra.mxu0 %v401
        %473 = vmatprep.subr.mxu0 0.0
        %474 = vmatpush2.msra.mxu0 %v400
        %475 = vmatprep.subr.mxu0 0.0
        %476 = vmatpush2.msra.mxu0 %v399
        %477 = vmatprep.subr.mxu0 0.0
        %478 = vmatpush2.msra.mxu0 %v398
        %479 = vmatprep.subr.mxu0 0.0
        %480 = vmatpush2.msra.mxu0 %v397
        %481 = vmatprep.subr.mxu0 0.0
        %482 = vmatpush2.msra.mxu0 %v396
        %483 = vmatprep.mubr.f32.mxu0 %v379
        %484 = vmatmul.mubr.f32.gmra.mxu0 %v378
        %v485 = vpop.f32.mrf.mxu0
        %v486 = vadd.f32 %v417, %v485
        %v487 = vpop.f32.mrf.mxu0
        %488 = vdwg.mxu0
        %v489 = vlaneseq
        %v490 = vand.u32 %v489, 127
        %vm491 = vcmp.lt.s32.totalorder %v490, 8
        %v492 = vxor.u32 %v486, 2147483648
        %v493 = vmul.f32 %v492, 1.442695
        %v494 = vpow.pop %v493
        %v495 = vadd.f32 %v494, 1.0
        %v496 = vrcp.pop %v495
        %v497 = vmul.f32 1.0, %v496
        %v498 = vsel %vm491, %v497, %v486
        %499 = vst [vmem:[%s268] sm:$0xff] %v498
        %p500 = scmp.lt.s32.totalorder %s20, 1
        %s501 = scalar_select %p500, %s20, 1
        %s502 = smul.addr %s501, 8
        %s503 = scalar_lea.vmem %s5, %s502
        // Predicated region
        $region53: #{_lambda_.1} parent=39 // pred_check
          %p504 = pneg %p148
        $region54: #{_lambda_.1} parent=39 // pred_check_branch
          %506 = sbr.rel (%p504) target = $region56
        $region55: #{_lambda_.1} parent=39 // pred_region
          _
        $region56: #{_lambda_.1} parent=39 // pred_fallthru
          _
      $region40: #{_lambda_.1} parent=5 // pred_fallthru
        _
      %p507 = scmp.le.s32.totalorder 2, %s15
      // Predicated region
      $region57: #{_lambda_.1} parent=5 // pred_check
        %p508 = pneg %p507
      $region58: #{_lambda_.1} parent=5 // pred_check_branch
        %510 = sbr.rel (%p508) target = $region60
      $region59: #{_lambda_.1} parent=5 // pred_region
        %s511 = ssub.s32 %s15, 2
        // Predicated region
        $region61: #{_lambda_.1} parent=59 // pred_check
          %p512 = pneg %p154
        $region62: #{_lambda_.1} parent=59 // pred_check_branch
          %514 = sbr.rel (%p512) target = $region64
        $region63: #{_lambda_.1} parent=59 // pred_region
          %p515 = scmp.lt.s32.totalorder %s21, 1
          %s516 = scalar_select %p515, %s21, 1
          %s517 = smul.addr %s516, 8
          %s518 = scalar_lea.vmem %s5, %s517
        $region64: #{_lambda_.1} parent=59 // pred_fallthru
          _
      $region60: #{_lambda_.1} parent=5 // pred_fallthru
        _
    $region6: #{_lambda_.1} parent=1 // loop_footer
      %s19 = sadd.s32 1, %s15
    $region7: #{_lambda_.1} parent=1 // loop_footer_branch
      %14 = sbr.rel target = $region3
    $region8: #{_lambda_.1} parent=1 // loop_exit
      _
    %519 = vsyncpa [#allocation3], 1
    %s520 = scalar_lea.sflag [#allocation3], 1
    %521 = vsyncpa %s520, 1
    %522 = vsyncpa [#allocation5], 1

</llo_original>
